<compile_context>
chip_gen: v5e
topology: v5e:2x2
jax: 0.10.0
libtpu: 0.0.40
codegen_flags: <defaults>
</compile_context>

<pallas_src>
import jax
import jax.numpy as jnp
from jax.experimental import pallas as pl
from jax.experimental.pallas import tpu as pltpu


def node_angle_gnn_kernel(zm_ref, src_ref, dst_ref, zw_ref,
                          w_ew_ref, b_ew_ref, w_edge_ref, bias_msg_ref,
                          w_msg_ref, w_out_ref, b_out_ref,
                          out_ref,
                          hm_ref, agg_ref):
    t = pl.program_id(0)
    nt = pl.num_programs(0)

    N = zm_ref.shape[0]
    TE = zw_ref.shape[0]

    @pl.when(t == 0)
    def _init():
        # transform-then-gather: apply lin_msg once at node granularity ([N,H]@[H,H])
        hm_ref[...] = jnp.dot(zm_ref[...], w_msg_ref[...],
                              preferred_element_type=jnp.float32)
        agg_ref[...] = jnp.zeros_like(agg_ref)

    # ---- per-edge-tile work -------------------------------------------------
    # edge-weight encoder: Linear(1, H/2) + ReLU. K=1 matmul == broadcast mul (VPU).
    ze = jnp.maximum(zw_ref[...] * w_ew_ref[...] + b_ew_ref[...], 0.0)        # [TE, H/2]

    # lin_edge(edge_attr)
    edge_term = jnp.dot(ze, w_edge_ref[...],
                        preferred_element_type=jnp.float32)                   # [TE, H]

    src = src_ref[...]                                                        # [TE, 1] int32
    dst = dst_ref[...]                                                        # [1, TE] int32

    # gather lin_msg(x_src) rows via an in-kernel one-hot tile (exact in f32)
    gather_oh = (jax.lax.broadcasted_iota(jnp.int32, (TE, N), 1)
                 == src).astype(jnp.float32)                                  # [TE, N]
    hm_src = jnp.dot(gather_oh, hm_ref[...],
                     preferred_element_type=jnp.float32)                      # [TE, H]

    # message = lin_msg(x_src) + lin_edge(ze) + (b_msg + b_edge)
    msg = hm_src + edge_term + bias_msg_ref[...]                              # [TE, H]

    # scatter-add onto destination nodes: one-hot^T built in-kernel.
    # padded edges carry dst == N (no iota value matches) -> contribute zero.
    scatter_oh = (jax.lax.broadcasted_iota(jnp.int32, (N, TE), 0)
                  == dst).astype(jnp.float32)                                 # [N, TE]
    agg_ref[...] += jnp.dot(scatter_oh, msg,
                            preferred_element_type=jnp.float32)               # [N, H]

    # ---- finalize: skip connection + ReLU + output linear (lane-dense 256) --
    @pl.when(t == nt - 1)
    def _finalize():
        z = jnp.maximum(agg_ref[...] + zm_ref[...], 0.0)                      # [N, H]
        out_ref[...] = (jnp.dot(z, w_out_ref[...],
                                preferred_element_type=jnp.float32)
                        + b_out_ref[...])                                     # [N, 256]


def node_angle_gnn(zm, zw, edge_index, params, *, edge_tile=128):
    N, H = zm.shape
    E = zw.shape[0]
    OUT = params["w_out"].shape[1]                       # 180
    OUT_PAD = pl.cdiv(OUT, 128) * 128                    # 256: lane-dense output store

    E_pad = pl.cdiv(E, edge_tile) * edge_tile
    n_tiles = E_pad // edge_tile

    # compact int32 edge indices (no [E,N] one-hots in HBM).
    # padded src -> 0 (valid row, harmless), padded dst -> N (dropped by scatter).
    src = jnp.zeros((E_pad, 1), jnp.int32).at[:E, 0].set(edge_index[0].astype(jnp.int32))
    dst = jnp.full((1, E_pad), N, jnp.int32).at[0, :E].set(edge_index[1].astype(jnp.int32))
    zw_p = jnp.zeros((E_pad, 1), jnp.float32).at[:E].set(zw.astype(jnp.float32))

    # consolidate per-message biases, pad output weights to 256 lanes
    bias_msg = params["b_msg"] + params["b_edge"]                              # [1, H]
    w_out_p = jnp.zeros((H, OUT_PAD), jnp.float32).at[:, :OUT].set(params["w_out"])
    b_out_p = jnp.zeros((1, OUT_PAD), jnp.float32).at[:, :OUT].set(params["b_out"])

    def full(shape):
        return pl.BlockSpec(shape, lambda i: (0, 0))

    out = pl.pallas_call(
        node_angle_gnn_kernel,
        out_shape=jax.ShapeDtypeStruct((N, OUT_PAD), jnp.float32),
        grid_spec=pltpu.PrefetchScalarGridSpec(
            num_scalar_prefetch=0,
            grid=(n_tiles,),
            in_specs=[
                full((N, H)),                                        # zm (resident)
                pl.BlockSpec((edge_tile, 1), lambda i: (i, 0)),      # src ids  [TE,1]
                pl.BlockSpec((1, edge_tile), lambda i: (0, i)),      # dst ids  [1,TE]
                pl.BlockSpec((edge_tile, 1), lambda i: (i, 0)),      # zw       [TE,1]
                full((1, H // 2)),                                   # w_ew
                full((1, H // 2)),                                   # b_ew
                full((H // 2, H)),                                   # w_edge
                full((1, H)),                                        # b_msg + b_edge
                full((H, H)),                                        # w_msg
                full((H, OUT_PAD)),                                  # w_out (padded)
                full((1, OUT_PAD)),                                  # b_out (padded)
            ],
            out_specs=pl.BlockSpec((N, OUT_PAD), lambda i: (0, 0)),  # resident output
            scratch_shapes=[
                pltpu.VMEM((N, H), jnp.float32),   # hm = zm @ w_msg (computed once)
                pltpu.VMEM((N, H), jnp.float32),   # agg accumulator (on-chip reduction)
            ],
        ),
        compiler_params=pltpu.CompilerParams(
            dimension_semantics=("arbitrary",),    # edge axis is a reduction
        ),
    )(zm, src, dst, zw_p,
      params["w_ew"], params["b_ew"], params["w_edge"], bias_msg,
      params["w_msg"], w_out_p, b_out_p)

    return out[:, :OUT]


def init_params(key, hidden_dim):
    H = hidden_dim
    ks = jax.random.split(key, 8)
    scale = 0.1
    # weights stored pre-transposed ([in, out]) so the kernel does x @ W
    return {
        "w_ew":   scale * jax.random.normal(ks[0], (1, H // 2), jnp.float32),
        "b_ew":   scale * jax.random.normal(ks[1], (1, H // 2), jnp.float32),
        "w_msg":  scale * jax.random.normal(ks[2], (H, H), jnp.float32),
        "b_msg":  scale * jax.random.normal(ks[3], (1, H), jnp.float32),
        "w_edge": scale * jax.random.normal(ks[4], (H // 2, H), jnp.float32),
        "b_edge": scale * jax.random.normal(ks[5], (1, H), jnp.float32),
        "w_out":  scale * jax.random.normal(ks[6], (H, 180), jnp.float32),
        "b_out":  scale * jax.random.normal(ks[7], (1, 180), jnp.float32),
    }


def reference(zm, zw, edge_index, p):
    # pure-JAX reference of the PyTorch forward
    ze = jax.nn.relu(zw @ p["w_ew"] + p["b_ew"])
    x_src = zm[edge_index[0]]
    msg = x_src @ p["w_msg"] + p["b_msg"] + ze @ p["w_edge"] + p["b_edge"]
    agg = jnp.zeros_like(zm).at[edge_index[1]].add(msg)
    z = jax.nn.relu(agg + zm)
    return z @ p["w_out"] + p["b_out"]


if __name__ == "__main__":
    hidden_dim = 32
    N = 16           # number of graph nodes
    E = 200          # number of edges -> padded to 256 -> 2 edge tiles of 128

    key = jax.random.PRNGKey(0)
    k_zm, k_zw, k_src, k_dst, k_par = jax.random.split(key, 5)

    zm = jax.random.normal(k_zm, (N, hidden_dim), jnp.float32)        # node features
    zw = jax.random.normal(k_zw, (E, 1), jnp.float32)                 # edge weights
    edge_index = jnp.stack([
        jax.random.randint(k_src, (E,), 0, N),
        jax.random.randint(k_dst, (E,), 0, N),
    ])                                                                # [2, E]

    params = init_params(k_par, hidden_dim)

    out = node_angle_gnn(zm, zw, edge_index, params)
    out = jax.block_until_ready(out)

    ref = reference(zm, zw, edge_index, params)
    assert out.shape == (N, 180)
    assert jnp.allclose(out, ref, atol=1e-4, rtol=1e-4), float(jnp.max(jnp.abs(out - ref)))
    print("KERNEL_OK")
</pallas_src>

<mosaic_0001>
module attributes {stable_mosaic.version = 11 : i64} {
  func.func @node_angle_gnn_kernel(%arg0: i32, %arg1: memref<16x32xf32, #tpu.memory_space<vmem>>, %arg2: memref<128x1xi32, #tpu.memory_space<vmem>>, %arg3: memref<1x128xi32, #tpu.memory_space<vmem>>, %arg4: memref<128x1xf32, #tpu.memory_space<vmem>>, %arg5: memref<1x16xf32, #tpu.memory_space<vmem>>, %arg6: memref<1x16xf32, #tpu.memory_space<vmem>>, %arg7: memref<16x32xf32, #tpu.memory_space<vmem>>, %arg8: memref<1x32xf32, #tpu.memory_space<vmem>>, %arg9: memref<32x32xf32, #tpu.memory_space<vmem>>, %arg10: memref<32x256xf32, #tpu.memory_space<vmem>>, %arg11: memref<1x256xf32, #tpu.memory_space<vmem>>, %arg12: memref<16x256xf32, #tpu.memory_space<vmem>>, %arg13: memref<16x32xf32, #tpu.memory_space<vmem>>, %arg14: memref<16x32xf32, #tpu.memory_space<vmem>>) attributes {dimension_semantics = [#tpu.dimension_semantics<arbitrary>], iteration_bounds = array<i64: 2>, scalar_prefetch = 0 : i64, scratch_operands = 2 : i64, tpu.core_type = #tpu.core_type<tc>, window_params = [{pipeline_mode = #tpu.pipeline_mode<synchronous>, transform_indices = @transform_0, window_bounds = array<i64: 16, 32>}, {transform_indices = @transform_1, window_bounds = array<i64: 128, 1>}, {transform_indices = @transform_2, window_bounds = array<i64: 1, 128>}, {transform_indices = @transform_3, window_bounds = array<i64: 128, 1>}, {pipeline_mode = #tpu.pipeline_mode<synchronous>, transform_indices = @transform_4, window_bounds = array<i64: 1, 16>}, {pipeline_mode = #tpu.pipeline_mode<synchronous>, transform_indices = @transform_5, window_bounds = array<i64: 1, 16>}, {pipeline_mode = #tpu.pipeline_mode<synchronous>, transform_indices = @transform_6, window_bounds = array<i64: 16, 32>}, {pipeline_mode = #tpu.pipeline_mode<synchronous>, transform_indices = @transform_7, window_bounds = array<i64: 1, 32>}, {pipeline_mode = #tpu.pipeline_mode<synchronous>, transform_indices = @transform_8, window_bounds = array<i64: 32, 32>}, {pipeline_mode = #tpu.pipeline_mode<synchronous>, transform_indices = @transform_9, window_bounds = array<i64: 32, 256>}, {pipeline_mode = #tpu.pipeline_mode<synchronous>, transform_indices = @transform_10, window_bounds = array<i64: 1, 256>}, {pipeline_mode = #tpu.pipeline_mode<synchronous>, transform_indices = @transform_11, window_bounds = array<i64: 16, 256>}]} {
    %c0_i32 = arith.constant 0 : i32
    %0 = arith.cmpi eq, %arg0, %c0_i32 : i32
    %1 = arith.extui %0 : i1 to i32
    %c0_i32_0 = arith.constant 0 : i32
    %2 = arith.cmpi ne, %1, %c0_i32_0 : i32
    scf.if %2 {
      %c0_24 = arith.constant 0 : index
      %c0_25 = arith.constant 0 : index
      %40 = vector.load %arg1[%c0_24, %c0_25] : memref<16x32xf32, #tpu.memory_space<vmem>>, vector<16x32xf32>
      %c0_26 = arith.constant 0 : index
      %c0_27 = arith.constant 0 : index
      %41 = vector.load %arg9[%c0_26, %c0_27] : memref<32x32xf32, #tpu.memory_space<vmem>>, vector<32x32xf32>
      %cst_28 = arith.constant dense<0.000000e+00> : vector<16x32xf32>
      %42 = tpu.matmul %40, %41, %cst_28 {dimension_numbers = #tpu.dot_dimension_numbers<[1], [0], [0], [1], [0, 0, 1, 1], [], []>} : vector<16x32xf32>, vector<32x32xf32>, vector<16x32xf32> -> vector<16x32xf32>
      %c0_29 = arith.constant 0 : index
      %c0_30 = arith.constant 0 : index
      %43 = vector.load %arg13[%c0_29, %c0_30] : memref<16x32xf32, #tpu.memory_space<vmem>>, vector<16x32xf32>
      tpu.vector_store %arg13[%c0_29, %c0_30], %42 {strides = array<i32>} : memref<16x32xf32, #tpu.memory_space<vmem>>, vector<16x32xf32>,
      %cst_31 = arith.constant 0.000000e+00 : f32
      %44 = vector.broadcast %cst_31 : f32 to vector<16x32xf32>
      %c0_32 = arith.constant 0 : index
      %c0_33 = arith.constant 0 : index
      %45 = vector.load %arg14[%c0_32, %c0_33] : memref<16x32xf32, #tpu.memory_space<vmem>>, vector<16x32xf32>
      tpu.vector_store %arg14[%c0_32, %c0_33], %44 {strides = array<i32>} : memref<16x32xf32, #tpu.memory_space<vmem>>, vector<16x32xf32>,
    } else {
    }
    %c0 = arith.constant 0 : index
    %c0_1 = arith.constant 0 : index
    %3 = vector.load %arg4[%c0, %c0_1] : memref<128x1xf32, #tpu.memory_space<vmem>>, vector<128x1xf32>
    %c0_2 = arith.constant 0 : index
    %c0_3 = arith.constant 0 : index
    %4 = vector.load %arg5[%c0_2, %c0_3] : memref<1x16xf32, #tpu.memory_space<vmem>>, vector<1x16xf32>
    %5 = vector.broadcast %3 : vector<128x1xf32> to vector<128x16xf32>
    %6 = vector.broadcast %4 : vector<1x16xf32> to vector<128x16xf32>
    %7 = arith.mulf %5, %6 : vector<128x16xf32>
    %c0_4 = arith.constant 0 : index
    %c0_5 = arith.constant 0 : index
    %8 = vector.load %arg6[%c0_4, %c0_5] : memref<1x16xf32, #tpu.memory_space<vmem>>, vector<1x16xf32>
    %9 = vector.broadcast %8 : vector<1x16xf32> to vector<128x16xf32>
    %10 = arith.addf %7, %9 : vector<128x16xf32>
    %cst = arith.constant 0.000000e+00 : f32
    %11 = vector.broadcast %cst : f32 to vector<128x16xf32>
    %12 = arith.maximumf %10, %11 : vector<128x16xf32>
    %c0_6 = arith.constant 0 : index
    %c0_7 = arith.constant 0 : index
    %13 = vector.load %arg7[%c0_6, %c0_7] : memref<16x32xf32, #tpu.memory_space<vmem>>, vector<16x32xf32>
    %cst_8 = arith.constant dense<0.000000e+00> : vector<128x32xf32>
    %14 = tpu.matmul %12, %13, %cst_8 {dimension_numbers = #tpu.dot_dimension_numbers<[1], [0], [0], [1], [0, 0, 1, 1], [], []>} : vector<128x16xf32>, vector<16x32xf32>, vector<128x32xf32> -> vector<128x32xf32>
    %c0_9 = arith.constant 0 : index
    %c0_10 = arith.constant 0 : index
    %15 = vector.load %arg2[%c0_9, %c0_10] : memref<128x1xi32, #tpu.memory_space<vmem>>, vector<128x1xi32>
    %c0_11 = arith.constant 0 : index
    %c0_12 = arith.constant 0 : index
    %16 = vector.load %arg3[%c0_11, %c0_12] : memref<1x128xi32, #tpu.memory_space<vmem>>, vector<1x128xi32>
    %17 = tpu.iota {dimensions = array<i32: 1>} : vector<128x16xi32>
    %18 = vector.broadcast %15 : vector<128x1xi32> to vector<128x16xi32>
    %19 = arith.cmpi eq, %17, %18 : vector<128x16xi32>
    %20 = arith.extui %19 : vector<128x16xi1> to vector<128x16xi32>
    %21 = arith.sitofp %20 : vector<128x16xi32> to vector<128x16xf32>
    %c0_13 = arith.constant 0 : index
    %c0_14 = arith.constant 0 : index
    %22 = vector.load %arg13[%c0_13, %c0_14] : memref<16x32xf32, #tpu.memory_space<vmem>>, vector<16x32xf32>
    %cst_15 = arith.constant dense<0.000000e+00> : vector<128x32xf32>
    %23 = tpu.matmul %21, %22, %cst_15 {dimension_numbers = #tpu.dot_dimension_numbers<[1], [0], [0], [1], [0, 0, 1, 1], [], []>} : vector<128x16xf32>, vector<16x32xf32>, vector<128x32xf32> -> vector<128x32xf32>
    %24 = arith.addf %23, %14 : vector<128x32xf32>
    %c0_16 = arith.constant 0 : index
    %c0_17 = arith.constant 0 : index
    %25 = vector.load %arg8[%c0_16, %c0_17] : memref<1x32xf32, #tpu.memory_space<vmem>>, vector<1x32xf32>
    %26 = vector.broadcast %25 : vector<1x32xf32> to vector<128x32xf32>
    %27 = arith.addf %24, %26 : vector<128x32xf32>
    %28 = tpu.iota {dimensions = array<i32: 0>} : vector<16x128xi32>
    %29 = vector.broadcast %16 : vector<1x128xi32> to vector<16x128xi32>
    %30 = arith.cmpi eq, %28, %29 : vector<16x128xi32>
    %31 = arith.extui %30 : vector<16x128xi1> to vector<16x128xi32>
    %32 = arith.sitofp %31 : vector<16x128xi32> to vector<16x128xf32>
    %c0_18 = arith.constant 0 : index
    %c0_19 = arith.constant 0 : index
    %33 = vector.load %arg14[%c0_18, %c0_19] : memref<16x32xf32, #tpu.memory_space<vmem>>, vector<16x32xf32>
    %cst_20 = arith.constant dense<0.000000e+00> : vector<16x32xf32>
    %34 = tpu.matmul %32, %27, %cst_20 {dimension_numbers = #tpu.dot_dimension_numbers<[1], [0], [0], [1], [0, 0, 1, 1], [], []>} : vector<16x128xf32>, vector<128x32xf32>, vector<16x32xf32> -> vector<16x32xf32>
    %35 = arith.addf %33, %34 : vector<16x32xf32>
    %c0_21 = arith.constant 0 : index
    %c0_22 = arith.constant 0 : index
    %36 = vector.load %arg14[%c0_21, %c0_22] : memref<16x32xf32, #tpu.memory_space<vmem>>, vector<16x32xf32>
    tpu.vector_store %arg14[%c0_21, %c0_22], %35 {strides = array<i32>} : memref<16x32xf32, #tpu.memory_space<vmem>>, vector<16x32xf32>,
    %c1_i32 = arith.constant 1 : i32
    %37 = arith.cmpi eq, %arg0, %c1_i32 : i32
    %38 = arith.extui %37 : i1 to i32
    %c0_i32_23 = arith.constant 0 : i32
    %39 = arith.cmpi ne, %38, %c0_i32_23 : i32
    scf.if %39 {
      %c0_24 = arith.constant 0 : index
      %c0_25 = arith.constant 0 : index
      %40 = vector.load %arg14[%c0_24, %c0_25] : memref<16x32xf32, #tpu.memory_space<vmem>>, vector<16x32xf32>
      %c0_26 = arith.constant 0 : index
      %c0_27 = arith.constant 0 : index
      %41 = vector.load %arg1[%c0_26, %c0_27] : memref<16x32xf32, #tpu.memory_space<vmem>>, vector<16x32xf32>
      %42 = arith.addf %40, %41 : vector<16x32xf32>
      %cst_28 = arith.constant 0.000000e+00 : f32
      %43 = vector.broadcast %cst_28 : f32 to vector<16x32xf32>
      %44 = arith.maximumf %42, %43 : vector<16x32xf32>
      %c0_29 = arith.constant 0 : index
      %c0_30 = arith.constant 0 : index
      %45 = vector.load %arg10[%c0_29, %c0_30] : memref<32x256xf32, #tpu.memory_space<vmem>>, vector<32x256xf32>
      %cst_31 = arith.constant dense<0.000000e+00> : vector<16x256xf32>
      %46 = tpu.matmul %44, %45, %cst_31 {dimension_numbers = #tpu.dot_dimension_numbers<[1], [0], [0], [1], [0, 0, 1, 1], [], []>} : vector<16x32xf32>, vector<32x256xf32>, vector<16x256xf32> -> vector<16x256xf32>
      %c0_32 = arith.constant 0 : index
      %c0_33 = arith.constant 0 : index
      %47 = vector.load %arg11[%c0_32, %c0_33] : memref<1x256xf32, #tpu.memory_space<vmem>>, vector<1x256xf32>
      %48 = vector.broadcast %47 : vector<1x256xf32> to vector<16x256xf32>
      %49 = arith.addf %46, %48 : vector<16x256xf32>
      %c0_34 = arith.constant 0 : index
      %c0_35 = arith.constant 0 : index
      %50 = vector.load %arg12[%c0_34, %c0_35] : memref<16x256xf32, #tpu.memory_space<vmem>>, vector<16x256xf32>
      tpu.vector_store %arg12[%c0_34, %c0_35], %49 {strides = array<i32>} : memref<16x256xf32, #tpu.memory_space<vmem>>, vector<16x256xf32>,
    } else {
    }
    return
  }
  func.func @transform_0(%arg0: i32) -> (i32, i32) {
    %c0_i32 = arith.constant 0 : i32
    %c0_i32_0 = arith.constant 0 : i32
    %c0_i32_1 = arith.constant 0 : i32
    return %c0_i32, %c0_i32_0 : i32, i32
  }
  func.func @transform_1(%arg0: i32) -> (i32, i32) {
    %c0_i32 = arith.constant 0 : i32
    %c0_i32_0 = arith.constant 0 : i32
    return %arg0, %c0_i32 : i32, i32
  }
  func.func @transform_2(%arg0: i32) -> (i32, i32) {
    %c0_i32 = arith.constant 0 : i32
    %c0_i32_0 = arith.constant 0 : i32
    return %c0_i32, %arg0 : i32, i32
  }
  func.func @transform_3(%arg0: i32) -> (i32, i32) {
    %c0_i32 = arith.constant 0 : i32
    %c0_i32_0 = arith.constant 0 : i32
    return %arg0, %c0_i32 : i32, i32
  }
  func.func @transform_4(%arg0: i32) -> (i32, i32) {
    %c0_i32 = arith.constant 0 : i32
    %c0_i32_0 = arith.constant 0 : i32
    %c0_i32_1 = arith.constant 0 : i32
    return %c0_i32, %c0_i32_0 : i32, i32
  }
  func.func @transform_5(%arg0: i32) -> (i32, i32) {
    %c0_i32 = arith.constant 0 : i32
    %c0_i32_0 = arith.constant 0 : i32
    %c0_i32_1 = arith.constant 0 : i32
    return %c0_i32, %c0_i32_0 : i32, i32
  }
  func.func @transform_6(%arg0: i32) -> (i32, i32) {
    %c0_i32 = arith.constant 0 : i32
    %c0_i32_0 = arith.constant 0 : i32
    %c0_i32_1 = arith.constant 0 : i32
    return %c0_i32, %c0_i32_0 : i32, i32
  }
  func.func @transform_7(%arg0: i32) -> (i32, i32) {
    %c0_i32 = arith.constant 0 : i32
    %c0_i32_0 = arith.constant 0 : i32
    %c0_i32_1 = arith.constant 0 : i32
    return %c0_i32, %c0_i32_0 : i32, i32
  }
  func.func @transform_8(%arg0: i32) -> (i32, i32) {
    %c0_i32 = arith.constant 0 : i32
    %c0_i32_0 = arith.constant 0 : i32
    %c0_i32_1 = arith.constant 0 : i32
    return %c0_i32, %c0_i32_0 : i32, i32
  }
  func.func @transform_9(%arg0: i32) -> (i32, i32) {
    %c0_i32 = arith.constant 0 : i32
    %c0_i32_0 = arith.constant 0 : i32
    %c0_i32_1 = arith.constant 0 : i32
    return %c0_i32, %c0_i32_0 : i32, i32
  }
  func.func @transform_10(%arg0: i32) -> (i32, i32) {
    %c0_i32 = arith.constant 0 : i32
    %c0_i32_0 = arith.constant 0 : i32
    %c0_i32_1 = arith.constant 0 : i32
    return %c0_i32, %c0_i32_0 : i32, i32
  }
  func.func @transform_11(%arg0: i32) -> (i32, i32) {
    %c0_i32 = arith.constant 0 : i32
    %c0_i32_0 = arith.constant 0 : i32
    %c0_i32_1 = arith.constant 0 : i32
    return %c0_i32, %c0_i32_0 : i32, i32
  }
}

</mosaic_0001>

<llo_original>
// kernel: tpu_custom_call.1
$region0: #{tpu_custom_call.1}
  #allocation0 [shape = 'u32[]', space=smem, size = 0x4, offset = 0x4, fixed_abs, tag = 'smem constant byte address 0x4 - core index']
  #allocation1 [shape = 'u32[72,128]{1,0:T(1,128)}', space=vmem, size = 0x9000, scoped, tag = 'internal scratch']
  #allocation2 [shape = 'f32[16,32]{1,0:T(8,128)}', space=vmem, size = 0x2000, scoped, tag = 'scratch operand']
  #allocation3 [shape = 'f32[16,32]{1,0:T(8,128)}', space=vmem, size = 0x2000, scoped, tag = 'scratch operand']
  %s0 = inlined_call_operand.vmem [shape: f32[16,32], index: 0, kind: input, shape index: {}]
  %s1 = inlined_call_operand.vmem [shape: s32[256,1], index: 1, kind: input, shape index: {}]
  %s2 = inlined_call_operand.vmem [shape: s32[1,256], index: 2, kind: input, shape index: {}]
  %s3 = inlined_call_operand.vmem [shape: f32[256,1], index: 3, kind: input, shape index: {}]
  %s4 = inlined_call_operand.vmem [shape: f32[1,16], index: 4, kind: input, shape index: {}]
  %s5 = inlined_call_operand.vmem [shape: f32[1,16], index: 5, kind: input, shape index: {}]
  %s6 = inlined_call_operand.vmem [shape: f32[16,32], index: 6, kind: input, shape index: {}]
  %s7 = inlined_call_operand.vmem [shape: f32[1,32], index: 7, kind: input, shape index: {}]
  %s8 = inlined_call_operand.vmem [shape: f32[32,32], index: 8, kind: input, shape index: {}]
  %s9 = inlined_call_operand.vmem [shape: f32[32,256], index: 9, kind: input, shape index: {}]
  %s10 = inlined_call_operand.vmem [shape: f32[1,256], index: 10, kind: input, shape index: {}]
  %s11 = inlined_call_operand.hbm [shape: f32[16,256], index: 11, kind: output, shape index: {}]
  %s12 = sld [smem:[#allocation0]]
  $region85: #{tpu_custom_call.1} parent=0
    _
  %s14 = ssub.s32 1, %s12
  %s15 = scalar_select 0, %s14, %s12
  $region1: #{tpu_custom_call.1} parent=0
    #allocation4 [shape = 'u8[16384]{0}', space=vmem, size = 0x4000, scoped, tag = 'output window, operand 0, single buffered']
    #allocation5 [shape = 's32[2]{0}', space=sflag, size = 0x8, scoped, tag = 'scoped memory for tpu_custom_call.1']
    %16 = vsyncpa [#allocation5], 0
    loop: start=0, step=1, limit=4
    $region2: #{tpu_custom_call.1} parent=1 // loop_pre_header
      _
    $region3: #{tpu_custom_call.1} parent=1 // loop_header
      %s18 = sphi 0, %s22
      %p19 = scmp.ge.s32.totalorder %s18, 4
      %s26 = sphi 0, %s26
      %s28 = sphi 0, %s26
      %s29 = sphi 0, %s28
      %s43 = sphi 0, %s29
      %s49 = sphi 0, %s51
      %s52 = sphi 0, %s49
      %s53 = sphi 0, %s52
      %s69 = sphi 0, %s53
      %s75 = sphi 0, %s77
      %s78 = sphi 0, %s75
      %s79 = sphi 0, %s78
      %s95 = sphi 0, %s79
      %s101 = sphi 0, %s103
      %s104 = sphi 0, %s101
      %s105 = sphi 0, %s104
      %s121 = sphi 0, %s105
      %s125 = sphi 0, %s125
      %s127 = sphi 0, %s125
      %s128 = sphi 0, %s127
      %s142 = sphi 0, %s128
      %s146 = sphi 0, %s146
      %s148 = sphi 0, %s146
      %s149 = sphi 0, %s148
      %s163 = sphi 0, %s149
      %s167 = sphi 0, %s167
      %s169 = sphi 0, %s167
      %s170 = sphi 0, %s169
      %s184 = sphi 0, %s170
      %s188 = sphi 0, %s188
      %s190 = sphi 0, %s188
      %s191 = sphi 0, %s190
      %s205 = sphi 0, %s191
      %s209 = sphi 0, %s209
      %s211 = sphi 0, %s209
      %s212 = sphi 0, %s211
      %s226 = sphi 0, %s212
      %s230 = sphi 0, %s230
      %s232 = sphi 0, %s230
      %s233 = sphi 0, %s232
      %s247 = sphi 0, %s233
      %s251 = sphi 0, %s251
      %s253 = sphi 0, %s251
      %s254 = sphi 0, %s253
      %s268 = sphi 0, %s254
      %s272 = sphi 0, %s272
      %s274 = sphi 0, %s272
      %s275 = sphi 0, %s274
      %s289 = sphi 0, %s275
    $region4: #{tpu_custom_call.1} parent=1 // loop_header_branch
      %21 = sbr.rel (%p19) target = $region8
    $region5: #{tpu_custom_call.1} parent=1 // loop_body
      %s23 = ssub.s32 %s18, 1
      %s24 = ssub.s32 %s18, 2
      %s25 = sadd.s32 %s18, 1
      %s27 = sadd.s32 %s26, 1
      %p30 = scmp.eq.s32.totalorder %s18, 1
      %p31 = scmp.ne.s32.totalorder %s26, %s28
      %p32 = scmp.eq.s32.totalorder %s18, 0
      %p33 = por %p31, %p32
      %p34 = scmp.ne.s32.totalorder %s26, %s28
      %p35 = scmp.eq.s32.totalorder %s23, 1
      %p36 = por %p34, %p35
      %p37 = scmp.ne.s32.totalorder %s28, %s29
      %p38 = scmp.eq.s32.totalorder %s23, 0
      %p39 = por %p37, %p38
      %p40 = scmp.ne.s32.totalorder %s28, %s29
      %p41 = scmp.eq.s32.totalorder %s24, 1
      %p42 = por %p40, %p41
      %p44 = scmp.ne.s32.totalorder %s29, %s43
      %p45 = scmp.eq.s32.totalorder %s24, 0
      %p46 = por %p44, %p45
      %s47 = ssub.s32 %s18, %s25
      %p48 = scmp.eq.s32.totalorder %s47, 0
      %s50 = sadd.s32 %s49, 1
      %s51 = scalar_select %p48, %s49, %s50
      %p54 = pneg %p48
      %p55 = scmp.eq.s32.totalorder %s18, 1
      %p56 = por %p54, %p55
      %p57 = scmp.ne.s32.totalorder %s49, %s52
      %p58 = scmp.eq.s32.totalorder %s18, 0
      %p59 = por %p57, %p58
      %p60 = scmp.ne.s32.totalorder %s49, %s52
      %p61 = scmp.eq.s32.totalorder %s23, 1
      %p62 = por %p60, %p61
      %p63 = scmp.ne.s32.totalorder %s52, %s53
      %p64 = scmp.eq.s32.totalorder %s23, 0
      %p65 = por %p63, %p64
      %p66 = scmp.ne.s32.totalorder %s52, %s53
      %p67 = scmp.eq.s32.totalorder %s24, 1
      %p68 = por %p66, %p67
      %p70 = scmp.ne.s32.totalorder %s53, %s69
      %p71 = scmp.eq.s32.totalorder %s24, 0
      %p72 = por %p70, %p71
      %s73 = ssub.s32 %s18, %s25
      %p74 = scmp.eq.s32.totalorder %s73, 0
      %s76 = sadd.s32 %s75, 1
      %s77 = scalar_select %p74, %s75, %s76
      %p80 = pneg %p74
      %p81 = scmp.eq.s32.totalorder %s18, 1
      %p82 = por %p80, %p81
      %p83 = scmp.ne.s32.totalorder %s75, %s78
      %p84 = scmp.eq.s32.totalorder %s18, 0
      %p85 = por %p83, %p84
      %p86 = scmp.ne.s32.totalorder %s75, %s78
      %p87 = scmp.eq.s32.totalorder %s23, 1
      %p88 = por %p86, %p87
      %p89 = scmp.ne.s32.totalorder %s78, %s79
      %p90 = scmp.eq.s32.totalorder %s23, 0
      %p91 = por %p89, %p90
      %p92 = scmp.ne.s32.totalorder %s78, %s79
      %p93 = scmp.eq.s32.totalorder %s24, 1
      %p94 = por %p92, %p93
      %p96 = scmp.ne.s32.totalorder %s79, %s95
      %p97 = scmp.eq.s32.totalorder %s24, 0
      %p98 = por %p96, %p97
      %s99 = ssub.s32 %s18, %s25
      %p100 = scmp.eq.s32.totalorder %s99, 0
      %s102 = sadd.s32 %s101, 1
      %s103 = scalar_select %p100, %s101, %s102
      %p106 = pneg %p100
      %p107 = scmp.eq.s32.totalorder %s18, 1
      %p108 = por %p106, %p107
      %p109 = scmp.ne.s32.totalorder %s101, %s104
      %p110 = scmp.eq.s32.totalorder %s18, 0
      %p111 = por %p109, %p110
      %p112 = scmp.ne.s32.totalorder %s101, %s104
      %p113 = scmp.eq.s32.totalorder %s23, 1
      %p114 = por %p112, %p113
      %p115 = scmp.ne.s32.totalorder %s104, %s105
      %p116 = scmp.eq.s32.totalorder %s23, 0
      %p117 = por %p115, %p116
      %p118 = scmp.ne.s32.totalorder %s104, %s105
      %p119 = scmp.eq.s32.totalorder %s24, 1
      %p120 = por %p118, %p119
      %p122 = scmp.ne.s32.totalorder %s105, %s121
      %p123 = scmp.eq.s32.totalorder %s24, 0
      %p124 = por %p122, %p123
      %s126 = sadd.s32 %s125, 1
      %p129 = scmp.eq.s32.totalorder %s18, 1
      %p130 = scmp.ne.s32.totalorder %s125, %s127
      %p131 = scmp.eq.s32.totalorder %s18, 0
      %p132 = por %p130, %p131
      %p133 = scmp.ne.s32.totalorder %s125, %s127
      %p134 = scmp.eq.s32.totalorder %s23, 1
      %p135 = por %p133, %p134
      %p136 = scmp.ne.s32.totalorder %s127, %s128
      %p137 = scmp.eq.s32.totalorder %s23, 0
      %p138 = por %p136, %p137
      %p139 = scmp.ne.s32.totalorder %s127, %s128
      %p140 = scmp.eq.s32.totalorder %s24, 1
      %p141 = por %p139, %p140
      %p143 = scmp.ne.s32.totalorder %s128, %s142
      %p144 = scmp.eq.s32.totalorder %s24, 0
      %p145 = por %p143, %p144
      %s147 = sadd.s32 %s146, 1
      %p150 = scmp.eq.s32.totalorder %s18, 1
      %p151 = scmp.ne.s32.totalorder %s146, %s148
      %p152 = scmp.eq.s32.totalorder %s18, 0
      %p153 = por %p151, %p152
      %p154 = scmp.ne.s32.totalorder %s146, %s148
      %p155 = scmp.eq.s32.totalorder %s23, 1
      %p156 = por %p154, %p155
      %p157 = scmp.ne.s32.totalorder %s148, %s149
      %p158 = scmp.eq.s32.totalorder %s23, 0
      %p159 = por %p157, %p158
      %p160 = scmp.ne.s32.totalorder %s148, %s149
      %p161 = scmp.eq.s32.totalorder %s24, 1
      %p162 = por %p160, %p161
      %p164 = scmp.ne.s32.totalorder %s149, %s163
      %p165 = scmp.eq.s32.totalorder %s24, 0
      %p166 = por %p164, %p165
      %s168 = sadd.s32 %s167, 1
      %p171 = scmp.eq.s32.totalorder %s18, 1
      %p172 = scmp.ne.s32.totalorder %s167, %s169
      %p173 = scmp.eq.s32.totalorder %s18, 0
      %p174 = por %p172, %p173
      %p175 = scmp.ne.s32.totalorder %s167, %s169
      %p176 = scmp.eq.s32.totalorder %s23, 1
      %p177 = por %p175, %p176
      %p178 = scmp.ne.s32.totalorder %s169, %s170
      %p179 = scmp.eq.s32.totalorder %s23, 0
      %p180 = por %p178, %p179
      %p181 = scmp.ne.s32.totalorder %s169, %s170
      %p182 = scmp.eq.s32.totalorder %s24, 1
      %p183 = por %p181, %p182
      %p185 = scmp.ne.s32.totalorder %s170, %s184
      %p186 = scmp.eq.s32.totalorder %s24, 0
      %p187 = por %p185, %p186
      %s189 = sadd.s32 %s188, 1
      %p192 = scmp.eq.s32.totalorder %s18, 1
      %p193 = scmp.ne.s32.totalorder %s188, %s190
      %p194 = scmp.eq.s32.totalorder %s18, 0
      %p195 = por %p193, %p194
      %p196 = scmp.ne.s32.totalorder %s188, %s190
      %p197 = scmp.eq.s32.totalorder %s23, 1
      %p198 = por %p196, %p197
      %p199 = scmp.ne.s32.totalorder %s190, %s191
      %p200 = scmp.eq.s32.totalorder %s23, 0
      %p201 = por %p199, %p200
      %p202 = scmp.ne.s32.totalorder %s190, %s191
      %p203 = scmp.eq.s32.totalorder %s24, 1
      %p204 = por %p202, %p203
      %p206 = scmp.ne.s32.totalorder %s191, %s205
      %p207 = scmp.eq.s32.totalorder %s24, 0
      %p208 = por %p206, %p207
      %s210 = sadd.s32 %s209, 1
      %p213 = scmp.eq.s32.totalorder %s18, 1
      %p214 = scmp.ne.s32.totalorder %s209, %s211
      %p215 = scmp.eq.s32.totalorder %s18, 0
      %p216 = por %p214, %p215
      %p217 = scmp.ne.s32.totalorder %s209, %s211
      %p218 = scmp.eq.s32.totalorder %s23, 1
      %p219 = por %p217, %p218
      %p220 = scmp.ne.s32.totalorder %s211, %s212
      %p221 = scmp.eq.s32.totalorder %s23, 0
      %p222 = por %p220, %p221
      %p223 = scmp.ne.s32.totalorder %s211, %s212
      %p224 = scmp.eq.s32.totalorder %s24, 1
      %p225 = por %p223, %p224
      %p227 = scmp.ne.s32.totalorder %s212, %s226
      %p228 = scmp.eq.s32.totalorder %s24, 0
      %p229 = por %p227, %p228
      %s231 = sadd.s32 %s230, 1
      %p234 = scmp.eq.s32.totalorder %s18, 1
      %p235 = scmp.ne.s32.totalorder %s230, %s232
      %p236 = scmp.eq.s32.totalorder %s18, 0
      %p237 = por %p235, %p236
      %p238 = scmp.ne.s32.totalorder %s230, %s232
      %p239 = scmp.eq.s32.totalorder %s23, 1
      %p240 = por %p238, %p239
      %p241 = scmp.ne.s32.totalorder %s232, %s233
      %p242 = scmp.eq.s32.totalorder %s23, 0
      %p243 = por %p241, %p242
      %p244 = scmp.ne.s32.totalorder %s232, %s233
      %p245 = scmp.eq.s32.totalorder %s24, 1
      %p246 = por %p244, %p245
      %p248 = scmp.ne.s32.totalorder %s233, %s247
      %p249 = scmp.eq.s32.totalorder %s24, 0
      %p250 = por %p248, %p249
      %s252 = sadd.s32 %s251, 1
      %p255 = scmp.eq.s32.totalorder %s18, 1
      %p256 = scmp.ne.s32.totalorder %s251, %s253
      %p257 = scmp.eq.s32.totalorder %s18, 0
      %p258 = por %p256, %p257
      %p259 = scmp.ne.s32.totalorder %s251, %s253
      %p260 = scmp.eq.s32.totalorder %s23, 1
      %p261 = por %p259, %p260
      %p262 = scmp.ne.s32.totalorder %s253, %s254
      %p263 = scmp.eq.s32.totalorder %s23, 0
      %p264 = por %p262, %p263
      %p265 = scmp.ne.s32.totalorder %s253, %s254
      %p266 = scmp.eq.s32.totalorder %s24, 1
      %p267 = por %p265, %p266
      %p269 = scmp.ne.s32.totalorder %s254, %s268
      %p270 = scmp.eq.s32.totalorder %s24, 0
      %p271 = por %p269, %p270
      %s273 = sadd.s32 %s272, 1
      %p276 = scmp.eq.s32.totalorder %s18, 1
      %p277 = scmp.ne.s32.totalorder %s272, %s274
      %p278 = scmp.eq.s32.totalorder %s18, 0
      %p279 = por %p277, %p278
      %p280 = scmp.ne.s32.totalorder %s272, %s274
      %p281 = scmp.eq.s32.totalorder %s23, 1
      %p282 = por %p280, %p281
      %p283 = scmp.ne.s32.totalorder %s274, %s275
      %p284 = scmp.eq.s32.totalorder %s23, 0
      %p285 = por %p283, %p284
      %p286 = scmp.ne.s32.totalorder %s274, %s275
      %p287 = scmp.eq.s32.totalorder %s24, 1
      %p288 = por %p286, %p287
      %p290 = scmp.ne.s32.totalorder %s275, %s289
      %p291 = scmp.eq.s32.totalorder %s24, 0
      %p292 = por %p290, %p291
      %p293 = scmp.le.s32.totalorder 1, %s18
      %p294 = scmp.lt.s32.totalorder %s18, 3
      %p295 = pnand %p293, %p294
      %p296 = pneg %p295
      // Predicated region
      $region9: #{tpu_custom_call.1} parent=5 // pred_check
        _
      $region10: #{tpu_custom_call.1} parent=5 // pred_check_branch
        %298 = sbr.rel (%p295) target = $region12
      $region11: #{tpu_custom_call.1} parent=5 // pred_region
        %s299 = ssub.s32 %s18, 1
        // Predicated region
        $region13: #{tpu_custom_call.1} parent=11 // pred_check
          %p300 = pneg %p39
        $region14: #{tpu_custom_call.1} parent=11 // pred_check_branch
          %302 = sbr.rel (%p300) target = $region16
        $region15: #{tpu_custom_call.1} parent=11 // pred_region
          _
        $region16: #{tpu_custom_call.1} parent=11 // pred_fallthru
          _
        // Predicated region
        $region17: #{tpu_custom_call.1} parent=11 // pred_check
          %p303 = pneg %p138
        $region18: #{tpu_custom_call.1} parent=11 // pred_check_branch
          %305 = sbr.rel (%p303) target = $region20
        $region19: #{tpu_custom_call.1} parent=11 // pred_region
          _
        $region20: #{tpu_custom_call.1} parent=11 // pred_fallthru
          _
        // Predicated region
        $region21: #{tpu_custom_call.1} parent=11 // pred_check
          %p306 = pneg %p159
        $region22: #{tpu_custom_call.1} parent=11 // pred_check_branch
          %308 = sbr.rel (%p306) target = $region24
        $region23: #{tpu_custom_call.1} parent=11 // pred_region
          _
        $region24: #{tpu_custom_call.1} parent=11 // pred_fallthru
          _
        // Predicated region
        $region25: #{tpu_custom_call.1} parent=11 // pred_check
          %p309 = pneg %p180
        $region26: #{tpu_custom_call.1} parent=11 // pred_check_branch
          %311 = sbr.rel (%p309) target = $region28
        $region27: #{tpu_custom_call.1} parent=11 // pred_region
          _
        $region28: #{tpu_custom_call.1} parent=11 // pred_fallthru
          _
        // Predicated region
        $region29: #{tpu_custom_call.1} parent=11 // pred_check
          %p312 = pneg %p201
        $region30: #{tpu_custom_call.1} parent=11 // pred_check_branch
          %314 = sbr.rel (%p312) target = $region32
        $region31: #{tpu_custom_call.1} parent=11 // pred_region
          _
        $region32: #{tpu_custom_call.1} parent=11 // pred_fallthru
          _
        // Predicated region
        $region33: #{tpu_custom_call.1} parent=11 // pred_check
          %p315 = pneg %p222
        $region34: #{tpu_custom_call.1} parent=11 // pred_check_branch
          %317 = sbr.rel (%p315) target = $region36
        $region35: #{tpu_custom_call.1} parent=11 // pred_region
          _
        $region36: #{tpu_custom_call.1} parent=11 // pred_fallthru
          _
        // Predicated region
        $region37: #{tpu_custom_call.1} parent=11 // pred_check
          %p318 = pneg %p243
        $region38: #{tpu_custom_call.1} parent=11 // pred_check_branch
          %320 = sbr.rel (%p318) target = $region40
        $region39: #{tpu_custom_call.1} parent=11 // pred_region
          _
        $region40: #{tpu_custom_call.1} parent=11 // pred_fallthru
          _
        // Predicated region
        $region41: #{tpu_custom_call.1} parent=11 // pred_check
          %p321 = pneg %p264
        $region42: #{tpu_custom_call.1} parent=11 // pred_check_branch
          %323 = sbr.rel (%p321) target = $region44
        $region43: #{tpu_custom_call.1} parent=11 // pred_region
          _
        $region44: #{tpu_custom_call.1} parent=11 // pred_fallthru
          _
      $region12: #{tpu_custom_call.1} parent=5 // pred_fallthru
        _
      %p324 = scmp.lt.s32.totalorder %s18, 2
      // Predicated region
      $region45: #{tpu_custom_call.1} parent=5 // pred_check
        %p325 = pneg %p324
      $region46: #{tpu_custom_call.1} parent=5 // pred_check_branch
        %327 = sbr.rel (%p325) target = $region48
      $region47: #{tpu_custom_call.1} parent=5 // pred_region
        // Predicated region
        $region49: #{tpu_custom_call.1} parent=47 // pred_check
          %p328 = pneg %p59
        $region50: #{tpu_custom_call.1} parent=47 // pred_check_branch
          %330 = sbr.rel (%p328) target = $region52
        $region51: #{tpu_custom_call.1} parent=47 // pred_region
          %s331 = smul.u32 16, %s18
          %p332 = scmp.lt.s32.totalorder %s331, 31
          %s333 = scalar_select %p332, %s331, 31
          %s334 = smul.addr %s333, 8
          %s335 = scalar_lea.vmem %s1, %s334
          %s336 = smul.u32 16, %s18
        $region52: #{tpu_custom_call.1} parent=47 // pred_fallthru
          _
        // Predicated region
        $region53: #{tpu_custom_call.1} parent=47 // pred_check
          %p337 = pneg %p85
        $region54: #{tpu_custom_call.1} parent=47 // pred_check_branch
          %339 = sbr.rel (%p337) target = $region56
        $region55: #{tpu_custom_call.1} parent=47 // pred_region
          %p340 = scmp.lt.s32.totalorder %s18, 1
          %s341 = scalar_select %p340, %s18, 1
          %s342 = scalar_lea.vmem %s2, %s341
        $region56: #{tpu_custom_call.1} parent=47 // pred_fallthru
          _
        // Predicated region
        $region57: #{tpu_custom_call.1} parent=47 // pred_check
          %p343 = pneg %p111
        $region58: #{tpu_custom_call.1} parent=47 // pred_check_branch
          %345 = sbr.rel (%p343) target = $region60
        $region59: #{tpu_custom_call.1} parent=47 // pred_region
          %s346 = smul.u32 16, %s18
          %p347 = scmp.lt.s32.totalorder %s346, 31
          %s348 = scalar_select %p347, %s346, 31
          %s349 = smul.addr %s348, 8
          %s350 = scalar_lea.vmem %s3, %s349
          %s351 = smul.u32 16, %s18
        $region60: #{tpu_custom_call.1} parent=47 // pred_fallthru
          _
      $region48: #{tpu_custom_call.1} parent=5 // pred_fallthru
        _
      %p352 = scmp.le.s32.totalorder 1, %s18
      %p353 = scmp.lt.s32.totalorder %s18, 3
      %p354 = pnand %p352, %p353
      %p355 = pneg %p354
      // Predicated region
      $region61: #{tpu_custom_call.1} parent=5 // pred_check
        _
      $region62: #{tpu_custom_call.1} parent=5 // pred_check_branch
        %357 = sbr.rel (%p354) target = $region64
      $region63: #{tpu_custom_call.1} parent=5 // pred_region
        %s358 = ssub.s32 %s18, 1
        %p359 = pneg %p39
        %p360 = pneg %p36
        %s361 = smul.u32 16, %s23
        %p362 = scmp.lt.s32.totalorder %s361, 31
        %s363 = scalar_select %p362, %s361, 31
        %s364 = smul.addr %s363, 8
        %s365 = scalar_lea.vmem %s1, %s364
        %p366 = pneg %p65
        %p367 = pneg %p62
        %p368 = scmp.lt.s32.totalorder %s23, 1
        %s369 = scalar_select %p368, %s23, 1
        %s370 = scalar_lea.vmem %s2, %s369
        %p371 = pneg %p91
        %p372 = pneg %p88
        %s373 = smul.u32 16, %s23
        %p374 = scmp.lt.s32.totalorder %s373, 31
        %s375 = scalar_select %p374, %s373, 31
        %s376 = smul.addr %s375, 8
        %s377 = scalar_lea.vmem %s3, %s376
        %p378 = pneg %p117
        %p379 = pneg %p114
        %p380 = pneg %p138
        %p381 = pneg %p135
        %p382 = pneg %p159
        %p383 = pneg %p156
        %p384 = pneg %p180
        %p385 = pneg %p177
        %p386 = pneg %p201
        %p387 = pneg %p198
        %p388 = pneg %p222
        %p389 = pneg %p219
        %p390 = pneg %p243
        %p391 = pneg %p240
        %p392 = pneg %p264
        %p393 = pneg %p261
        %p394 = pneg %p285
        %p395 = pneg %p282
        %s396 = smul.u32 16, %s23
        %p397 = scmp.lt.s32.totalorder %s396, 31
        %s398 = scalar_select %p397, %s396, 31
        %s399 = smul.addr %s398, 8
        %s400 = scalar_lea.vmem %s1, %s399
        %s401 = smul.u32 16, %s23
        %p402 = scmp.lt.s32.totalorder %s23, 1
        %s403 = scalar_select %p402, %s23, 1
        %s404 = scalar_lea.vmem %s2, %s403
        %s405 = smul.u32 16, %s23
        %p406 = scmp.lt.s32.totalorder %s405, 31
        %s407 = scalar_select %p406, %s405, 31
        %s408 = smul.addr %s407, 8
        %s409 = scalar_lea.vmem %s3, %s408
        %s410 = smul.u32 16, %s23
        %p411 = scmp.eq.s32.totalorder %s23, 0
        // Predicated region
        $region65: #{tpu_custom_call.1} parent=63 // pred_check
          %p412 = pneg %p411
        $region66: #{tpu_custom_call.1} parent=63 // pred_check_branch
          %414 = sbr.rel (%p412) target = $region68
        $region67: #{tpu_custom_call.1} parent=63 // pred_region
          %v415 = vld [vmem:[%s0] sm:$0xff]
          %v416 = vld [vmem:[%s0 + $0x8] sm:$0xff]
          %v417 = vld [vmem:[%s8] sm:$0xff]
          %v418 = vld [vmem:[%s8 + $0x8] sm:$0xff]
          %v419 = vld [vmem:[%s8 + $0x10] sm:$0xff]
          %v420 = vld [vmem:[%s8 + $0x18] sm:$0xff]
          %vm421 = vcmask 261120
          %v423 = vsel %vm421, %v415, 0
          %v426 = vsel %vm421, %v416, 0
          %428 = vmatpush.msra.mxu0 0.0
          %429 = vmatpush.msra.mxu0 0.0
          %430 = vmatpush.msra.mxu0 0.0
          %431 = vmatpush.msra.mxu0 0.0
          %432 = vmatpush.msra.mxu0 0.0
          %433 = vmatpush.msra.mxu0 0.0
          %434 = vmatpush.msra.mxu0 0.0
          %435 = vmatpush.msra.mxu0 0.0
          %436 = vmatpush.msra.mxu0 0.0
          %437 = vmatpush.msra.mxu0 0.0
          %438 = vmatpush.msra.mxu0 0.0
          %439 = vmatpush.msra.mxu0 0.0
          %440 = vmatpush.msra.mxu0 %v420
          %441 = vmatpush.msra.mxu0 %v419
          %442 = vmatpush.msra.mxu0 %v418
          %443 = vmatpush.msra.mxu0 %v417
          %444 = vmatmul.f32.gmra.mxu0 %v423
          %v445 = vpop.f32.mrf.mxu0
          %v446 = vadd.f32 0.0, %v445
          %447 = vmatmul.f32.gmra.mxu0 %v426
          %v448 = vpop.f32.mrf.mxu0
          %v449 = vadd.f32 0.0, %v448
          %450 = vdwg.mxu0
          %451 = vst.msk [vmem:[#allocation2] sm:$0xff] %vm421, %v446
          %452 = vst.msk [vmem:[#allocation2 + $0x8] sm:$0xff] %vm421, %v449
          %453 = vst.msk [vmem:[#allocation3] sm:$0xff] %vm421, 0.0
          %454 = vst.msk [vmem:[#allocation3 + $0x8] sm:$0xff] %vm421, 0.0
        $region68: #{tpu_custom_call.1} parent=63 // pred_fallthru
          _
        %v455 = vld [vmem:[%s409] sm:$0xff]
        %v456 = vld [vmem:[%s409 + $0x8] sm:$0xff]
        %v457 = vld [vmem:[%s409 + $0x10] sm:$0xff]
        %v458 = vld [vmem:[%s409 + $0x18] sm:$0xff]
        %v459 = vld [vmem:[%s409 + $0x20] sm:$0xff]
        %v460 = vld [vmem:[%s409 + $0x28] sm:$0xff]
        %v461 = vld [vmem:[%s409 + $0x30] sm:$0xff]
        %v462 = vld [vmem:[%s409 + $0x38] sm:$0xff]
        %v463 = vld [vmem:[%s409 + $0x40] sm:$0xff]
        %v464 = vld [vmem:[%s409 + $0x48] sm:$0xff]
        %v465 = vld [vmem:[%s409 + $0x50] sm:$0xff]
        %v466 = vld [vmem:[%s409 + $0x58] sm:$0xff]
        %v467 = vld [vmem:[%s409 + $0x60] sm:$0xff]
        %v468 = vld [vmem:[%s409 + $0x68] sm:$0xff]
        %v469 = vld [vmem:[%s409 + $0x70] sm:$0xff]
        %v470 = vld [vmem:[%s409 + $0x78] sm:$0xff]
        %v471 = vld [vmem:[%s4] sm:$0x1]
        %473 = vset.pattern.permute.xlu0 0
        %474 = vperm.xlu0 %473, %v455
        %v475 = vpop.permute.xlu0 %474
        %478 = vset.pattern.permute.xlu0 0
        %479 = vperm.xlu0 %478, %v456
        %v480 = vpop.permute.xlu0 %479
        %483 = vset.pattern.permute.xlu0 0
        %484 = vperm.xlu0 %483, %v457
        %v485 = vpop.permute.xlu0 %484
        %488 = vset.pattern.permute.xlu0 0
        %489 = vperm.xlu0 %488, %v458
        %v490 = vpop.permute.xlu0 %489
        %493 = vset.pattern.permute.xlu0 0
        %494 = vperm.xlu0 %493, %v459
        %v495 = vpop.permute.xlu0 %494
        %498 = vset.pattern.permute.xlu0 0
        %499 = vperm.xlu0 %498, %v460
        %v500 = vpop.permute.xlu0 %499
        %503 = vset.pattern.permute.xlu0 0
        %504 = vperm.xlu0 %503, %v461
        %v505 = vpop.permute.xlu0 %504
        %508 = vset.pattern.permute.xlu0 0
        %509 = vperm.xlu0 %508, %v462
        %v510 = vpop.permute.xlu0 %509
        %513 = vset.pattern.permute.xlu0 0
        %514 = vperm.xlu0 %513, %v463
        %v515 = vpop.permute.xlu0 %514
        %518 = vset.pattern.permute.xlu0 0
        %519 = vperm.xlu0 %518, %v464
        %v520 = vpop.permute.xlu0 %519
        %523 = vset.pattern.permute.xlu0 0
        %524 = vperm.xlu0 %523, %v465
        %v525 = vpop.permute.xlu0 %524
        %528 = vset.pattern.permute.xlu0 0
        %529 = vperm.xlu0 %528, %v466
        %v530 = vpop.permute.xlu0 %529
        %533 = vset.pattern.permute.xlu0 0
        %534 = vperm.xlu0 %533, %v467
        %v535 = vpop.permute.xlu0 %534
        %538 = vset.pattern.permute.xlu0 0
        %539 = vperm.xlu0 %538, %v468
        %v540 = vpop.permute.xlu0 %539
        %543 = vset.pattern.permute.xlu0 0
        %544 = vperm.xlu0 %543, %v469
        %v545 = vpop.permute.xlu0 %544
        %548 = vset.pattern.permute.xlu0 0
        %549 = vperm.xlu0 %548, %v470
        %v550 = vpop.permute.xlu0 %549
        %v553 = vperm.slane %v471, 0
        %v555 = vmul.f32 %v475, %v553
        %v556 = vmul.f32 %v480, %v553
        %v557 = vmul.f32 %v485, %v553
        %v558 = vmul.f32 %v490, %v553
        %v559 = vmul.f32 %v495, %v553
        %v560 = vmul.f32 %v500, %v553
        %v561 = vmul.f32 %v505, %v553
        %v562 = vmul.f32 %v510, %v553
        %v563 = vmul.f32 %v515, %v553
        %v564 = vmul.f32 %v520, %v553
        %v565 = vmul.f32 %v525, %v553
        %v566 = vmul.f32 %v530, %v553
        %v567 = vmul.f32 %v535, %v553
        %v568 = vmul.f32 %v540, %v553
        %v569 = vmul.f32 %v545, %v553
        %v570 = vmul.f32 %v550, %v553
        %v571 = vld [vmem:[%s5] sm:$0x1]
        %v573 = vperm.slane %v571, 0
        %v575 = vadd.f32 %v555, %v573
        %v576 = vadd.f32 %v556, %v573
        %v577 = vadd.f32 %v557, %v573
        %v578 = vadd.f32 %v558, %v573
        %v579 = vadd.f32 %v559, %v573
        %v580 = vadd.f32 %v560, %v573
        %v581 = vadd.f32 %v561, %v573
        %v582 = vadd.f32 %v562, %v573
        %v583 = vadd.f32 %v563, %v573
        %v584 = vadd.f32 %v564, %v573
        %v585 = vadd.f32 %v565, %v573
        %v586 = vadd.f32 %v566, %v573
        %v587 = vadd.f32 %v567, %v573
        %v588 = vadd.f32 %v568, %v573
        %v589 = vadd.f32 %v569, %v573
        %v590 = vadd.f32 %v570, %v573
        %v591 = vmax.f32 %v575, 0.0
        %v592 = vmax.f32 %v576, 0.0
        %v593 = vmax.f32 %v577, 0.0
        %v594 = vmax.f32 %v578, 0.0
        %v595 = vmax.f32 %v579, 0.0
        %v596 = vmax.f32 %v580, 0.0
        %v597 = vmax.f32 %v581, 0.0
        %v598 = vmax.f32 %v582, 0.0
        %v599 = vmax.f32 %v583, 0.0
        %v600 = vmax.f32 %v584, 0.0
        %v601 = vmax.f32 %v585, 0.0
        %v602 = vmax.f32 %v586, 0.0
        %v603 = vmax.f32 %v587, 0.0
        %v604 = vmax.f32 %v588, 0.0
        %v605 = vmax.f32 %v589, 0.0
        %v606 = vmax.f32 %v590, 0.0
        %v607 = vld [vmem:[%s6] sm:$0xff]
        %v608 = vld [vmem:[%s6 + $0x8] sm:$0xff]
        %vm609 = vcmask 130048
        %v611 = vsel %vm609, %v591, 0
        %v614 = vsel %vm609, %v592, 0
        %v617 = vsel %vm609, %v593, 0
        %v620 = vsel %vm609, %v594, 0
        %v623 = vsel %vm609, %v595, 0
        %v626 = vsel %vm609, %v596, 0
        %v629 = vsel %vm609, %v597, 0
        %v632 = vsel %vm609, %v598, 0
        %v635 = vsel %vm609, %v599, 0
        %v638 = vsel %vm609, %v600, 0
        %v641 = vsel %vm609, %v601, 0
        %v644 = vsel %vm609, %v602, 0
        %v647 = vsel %vm609, %v603, 0
        %v650 = vsel %vm609, %v604, 0
        %v653 = vsel %vm609, %v605, 0
        %v656 = vsel %vm609, %v606, 0
        %658 = vmatpush.msra.mxu0 0.0
        %659 = vmatpush.msra.mxu0 0.0
        %660 = vmatpush.msra.mxu0 0.0
        %661 = vmatpush.msra.mxu0 0.0
        %662 = vmatpush.msra.mxu0 0.0
        %663 = vmatpush.msra.mxu0 0.0
        %664 = vmatpush.msra.mxu0 0.0
        %665 = vmatpush.msra.mxu0 0.0
        %666 = vmatpush.msra.mxu0 0.0
        %667 = vmatpush.msra.mxu0 0.0
        %668 = vmatpush.msra.mxu0 0.0
        %669 = vmatpush.msra.mxu0 0.0
        %670 = vmatpush.msra.mxu0 0.0
        %671 = vmatpush.msra.mxu0 0.0
        %672 = vmatpush.msra.mxu0 %v608
        %673 = vmatpush.msra.mxu0 %v607
        %674 = vmatmul.f32.gmra.mxu0 %v611
        %v675 = vpop.f32.mrf.mxu0
        %v676 = vadd.f32 0.0, %v675
        %677 = vmatmul.f32.gmra.mxu0 %v614
        %v678 = vpop.f32.mrf.mxu0
        %v679 = vadd.f32 0.0, %v678
        %680 = vmatmul.f32.gmra.mxu0 %v617
        %v681 = vpop.f32.mrf.mxu0
        %v682 = vadd.f32 0.0, %v681
        %683 = vmatmul.f32.gmra.mxu0 %v620
        %v684 = vpop.f32.mrf.mxu0
        %v685 = vadd.f32 0.0, %v684
        %686 = vmatmul.f32.gmra.mxu0 %v623
        %v687 = vpop.f32.mrf.mxu0
        %v688 = vadd.f32 0.0, %v687
        %689 = vmatmul.f32.gmra.mxu0 %v626
        %v690 = vpop.f32.mrf.mxu0
        %v691 = vadd.f32 0.0, %v690
        %692 = vmatmul.f32.gmra.mxu0 %v629
        %v693 = vpop.f32.mrf.mxu0
        %v694 = vadd.f32 0.0, %v693
        %695 = vmatmul.f32.gmra.mxu0 %v632
        %v696 = vpop.f32.mrf.mxu0
        %v697 = vadd.f32 0.0, %v696
        %698 = vmatmul.f32.gmra.mxu0 %v635
        %v699 = vpop.f32.mrf.mxu0
        %v700 = vadd.f32 0.0, %v699
        %701 = vmatmul.f32.gmra.mxu0 %v638
        %v702 = vpop.f32.mrf.mxu0
        %v703 = vadd.f32 0.0, %v702
        %704 = vmatmul.f32.gmra.mxu0 %v641
        %v705 = vpop.f32.mrf.mxu0
        %v706 = vadd.f32 0.0, %v705
        %707 = vmatmul.f32.gmra.mxu0 %v644
        %v708 = vpop.f32.mrf.mxu0
        %v709 = vadd.f32 0.0, %v708
        %710 = vmatmul.f32.gmra.mxu0 %v647
        %v711 = vpop.f32.mrf.mxu0
        %v712 = vadd.f32 0.0, %v711
        %713 = vmatmul.f32.gmra.mxu0 %v650
        %v714 = vpop.f32.mrf.mxu0
        %v715 = vadd.f32 0.0, %v714
        %716 = vmatmul.f32.gmra.mxu0 %v653
        %v717 = vpop.f32.mrf.mxu0
        %v718 = vadd.f32 0.0, %v717
        %719 = vmatmul.f32.gmra.mxu0 %v656
        %v720 = vpop.f32.mrf.mxu0
        %v721 = vadd.f32 0.0, %v720
        %722 = vdwg.mxu0
        %v723 = vld [vmem:[%s400] sm:$0xff]
        %v724 = vld [vmem:[%s400 + $0x8] sm:$0xff]
        %v725 = vld [vmem:[%s400 + $0x10] sm:$0xff]
        %v726 = vld [vmem:[%s400 + $0x18] sm:$0xff]
        %v727 = vld [vmem:[%s400 + $0x20] sm:$0xff]
        %v728 = vld [vmem:[%s400 + $0x28] sm:$0xff]
        %v729 = vld [vmem:[%s400 + $0x30] sm:$0xff]
        %v730 = vld [vmem:[%s400 + $0x38] sm:$0xff]
        %v731 = vld [vmem:[%s400 + $0x40] sm:$0xff]
        %v732 = vld [vmem:[%s400 + $0x48] sm:$0xff]
        %v733 = vld [vmem:[%s400 + $0x50] sm:$0xff]
        %v734 = vld [vmem:[%s400 + $0x58] sm:$0xff]
        %v735 = vld [vmem:[%s400 + $0x60] sm:$0xff]
        %v736 = vld [vmem:[%s400 + $0x68] sm:$0xff]
        %v737 = vld [vmem:[%s400 + $0x70] sm:$0xff]
        %v738 = vld [vmem:[%s400 + $0x78] sm:$0xff]
        %v739 = vld [vmem:[%s404] sm:$0x1]
        %v740 = vlaneseq
        %v741 = vand.u32 %v740, 127
        %742 = vset.pattern.permute.xlu0 0
        %743 = vperm.xlu0 %742, %v723
        %v744 = vpop.permute.xlu0 %743
        %745 = vset.pattern.permute.xlu0 0
        %746 = vperm.xlu0 %745, %v724
        %v747 = vpop.permute.xlu0 %746
        %748 = vset.pattern.permute.xlu0 0
        %749 = vperm.xlu0 %748, %v725
        %v750 = vpop.permute.xlu0 %749
        %751 = vset.pattern.permute.xlu0 0
        %752 = vperm.xlu0 %751, %v726
        %v753 = vpop.permute.xlu0 %752
        %754 = vset.pattern.permute.xlu0 0
        %755 = vperm.xlu0 %754, %v727
        %v756 = vpop.permute.xlu0 %755
        %757 = vset.pattern.permute.xlu0 0
        %758 = vperm.xlu0 %757, %v728
        %v759 = vpop.permute.xlu0 %758
        %760 = vset.pattern.permute.xlu0 0
        %761 = vperm.xlu0 %760, %v729
        %v762 = vpop.permute.xlu0 %761
        %763 = vset.pattern.permute.xlu0 0
        %764 = vperm.xlu0 %763, %v730
        %v765 = vpop.permute.xlu0 %764
        %766 = vset.pattern.permute.xlu0 0
        %767 = vperm.xlu0 %766, %v731
        %v768 = vpop.permute.xlu0 %767
        %769 = vset.pattern.permute.xlu0 0
        %770 = vperm.xlu0 %769, %v732
        %v771 = vpop.permute.xlu0 %770
        %772 = vset.pattern.permute.xlu0 0
        %773 = vperm.xlu0 %772, %v733
        %v774 = vpop.permute.xlu0 %773
        %775 = vset.pattern.permute.xlu0 0
        %776 = vperm.xlu0 %775, %v734
        %v777 = vpop.permute.xlu0 %776
        %778 = vset.pattern.permute.xlu0 0
        %779 = vperm.xlu0 %778, %v735
        %v780 = vpop.permute.xlu0 %779
        %781 = vset.pattern.permute.xlu0 0
        %782 = vperm.xlu0 %781, %v736
        %v783 = vpop.permute.xlu0 %782
        %784 = vset.pattern.permute.xlu0 0
        %785 = vperm.xlu0 %784, %v737
        %v786 = vpop.permute.xlu0 %785
        %787 = vset.pattern.permute.xlu0 0
        %788 = vperm.xlu0 %787, %v738
        %v789 = vpop.permute.xlu0 %788
        %vm790 = vcmp.eq.s32.totalorder %v741, %v744
        %vm791 = vcmp.eq.s32.totalorder %v741, %v747
        %vm792 = vcmp.eq.s32.totalorder %v741, %v750
        %vm793 = vcmp.eq.s32.totalorder %v741, %v753
        %vm794 = vcmp.eq.s32.totalorder %v741, %v756
        %vm795 = vcmp.eq.s32.totalorder %v741, %v759
        %vm796 = vcmp.eq.s32.totalorder %v741, %v762
        %vm797 = vcmp.eq.s32.totalorder %v741, %v765
        %vm798 = vcmp.eq.s32.totalorder %v741, %v768
        %vm799 = vcmp.eq.s32.totalorder %v741, %v771
        %vm800 = vcmp.eq.s32.totalorder %v741, %v774
        %vm801 = vcmp.eq.s32.totalorder %v741, %v777
        %vm802 = vcmp.eq.s32.totalorder %v741, %v780
        %vm803 = vcmp.eq.s32.totalorder %v741, %v783
        %vm804 = vcmp.eq.s32.totalorder %v741, %v786
        %vm805 = vcmp.eq.s32.totalorder %v741, %v789
        %v806 = vsel %vm790, 1, 0
        %v807 = vsel %vm791, 1, 0
        %v808 = vsel %vm792, 1, 0
        %v809 = vsel %vm793, 1, 0
        %v810 = vsel %vm794, 1, 0
        %v811 = vsel %vm795, 1, 0
        %v812 = vsel %vm796, 1, 0
        %v813 = vsel %vm797, 1, 0
        %v814 = vsel %vm798, 1, 0
        %v815 = vsel %vm799, 1, 0
        %v816 = vsel %vm800, 1, 0
        %v817 = vsel %vm801, 1, 0
        %v818 = vsel %vm802, 1, 0
        %v819 = vsel %vm803, 1, 0
        %v820 = vsel %vm804, 1, 0
        %v821 = vsel %vm805, 1, 0
        %v822 = vcvt.s32.f32 %v806
        %v823 = vcvt.s32.f32 %v807
        %v824 = vcvt.s32.f32 %v808
        %v825 = vcvt.s32.f32 %v809
        %v826 = vcvt.s32.f32 %v810
        %v827 = vcvt.s32.f32 %v811
        %v828 = vcvt.s32.f32 %v812
        %v829 = vcvt.s32.f32 %v813
        %v830 = vcvt.s32.f32 %v814
        %v831 = vcvt.s32.f32 %v815
        %v832 = vcvt.s32.f32 %v816
        %v833 = vcvt.s32.f32 %v817
        %v834 = vcvt.s32.f32 %v818
        %v835 = vcvt.s32.f32 %v819
        %v836 = vcvt.s32.f32 %v820
        %v837 = vcvt.s32.f32 %v821
        %v838 = vld [vmem:[#allocation2] sm:$0xff]
        %v839 = vld [vmem:[#allocation2 + $0x8] sm:$0xff]
        %v841 = vsel %vm609, %v822, 0
        %v844 = vsel %vm609, %v823, 0
        %v847 = vsel %vm609, %v824, 0
        %v850 = vsel %vm609, %v825, 0
        %v853 = vsel %vm609, %v826, 0
        %v856 = vsel %vm609, %v827, 0
        %v859 = vsel %vm609, %v828, 0
        %v862 = vsel %vm609, %v829, 0
        %v865 = vsel %vm609, %v830, 0
        %v868 = vsel %vm609, %v831, 0
        %v871 = vsel %vm609, %v832, 0
        %v874 = vsel %vm609, %v833, 0
        %v877 = vsel %vm609, %v834, 0
        %v880 = vsel %vm609, %v835, 0
        %v883 = vsel %vm609, %v836, 0
        %v886 = vsel %vm609, %v837, 0
        %888 = vmatpush.msra.mxu0 0.0
        %889 = vmatpush.msra.mxu0 0.0
        %890 = vmatpush.msra.mxu0 0.0
        %891 = vmatpush.msra.mxu0 0.0
        %892 = vmatpush.msra.mxu0 0.0
        %893 = vmatpush.msra.mxu0 0.0
        %894 = vmatpush.msra.mxu0 0.0
        %895 = vmatpush.msra.mxu0 0.0
        %896 = vmatpush.msra.mxu0 0.0
        %897 = vmatpush.msra.mxu0 0.0
        %898 = vmatpush.msra.mxu0 0.0
        %899 = vmatpush.msra.mxu0 0.0
        %900 = vmatpush.msra.mxu0 0.0
        %901 = vmatpush.msra.mxu0 0.0
        %902 = vmatpush.msra.mxu0 %v839
        %903 = vmatpush.msra.mxu0 %v838
        %904 = vmatmul.f32.gmra.mxu0 %v841
        %v905 = vpop.f32.mrf.mxu0
        %v906 = vadd.f32 %v676, %v905
        %907 = vmatmul.f32.gmra.mxu0 %v844
        %v908 = vpop.f32.mrf.mxu0
        %v909 = vadd.f32 %v679, %v908
        %910 = vmatmul.f32.gmra.mxu0 %v847
        %v911 = vpop.f32.mrf.mxu0
        %v912 = vadd.f32 %v682, %v911
        %913 = vmatmul.f32.gmra.mxu0 %v850
        %v914 = vpop.f32.mrf.mxu0
        %v915 = vadd.f32 %v685, %v914
        %916 = vmatmul.f32.gmra.mxu0 %v853
        %v917 = vpop.f32.mrf.mxu0
        %v918 = vadd.f32 %v688, %v917
        %919 = vmatmul.f32.gmra.mxu0 %v856
        %v920 = vpop.f32.mrf.mxu0
        %v921 = vadd.f32 %v691, %v920
        %922 = vmatmul.f32.gmra.mxu0 %v859
        %v923 = vpop.f32.mrf.mxu0
        %v924 = vadd.f32 %v694, %v923
        %925 = vmatmul.f32.gmra.mxu0 %v862
        %v926 = vpop.f32.mrf.mxu0
        %v927 = vadd.f32 %v697, %v926
        %928 = vmatmul.f32.gmra.mxu0 %v865
        %v929 = vpop.f32.mrf.mxu0
        %v930 = vadd.f32 %v700, %v929
        %931 = vmatmul.f32.gmra.mxu0 %v868
        %v932 = vpop.f32.mrf.mxu0
        %v933 = vadd.f32 %v703, %v932
        %934 = vmatmul.f32.gmra.mxu0 %v871
        %v935 = vpop.f32.mrf.mxu0
        %v936 = vadd.f32 %v706, %v935
        %937 = vmatmul.f32.gmra.mxu0 %v874
        %v938 = vpop.f32.mrf.mxu0
        %v939 = vadd.f32 %v709, %v938
        %940 = vmatmul.f32.gmra.mxu0 %v877
        %v941 = vpop.f32.mrf.mxu0
        %v942 = vadd.f32 %v712, %v941
        %943 = vmatmul.f32.gmra.mxu0 %v880
        %v944 = vpop.f32.mrf.mxu0
        %v945 = vadd.f32 %v715, %v944
        %946 = vmatmul.f32.gmra.mxu0 %v883
        %v947 = vpop.f32.mrf.mxu0
        %v948 = vadd.f32 %v718, %v947
        %949 = vmatmul.f32.gmra.mxu0 %v886
        %v950 = vpop.f32.mrf.mxu0
        %v951 = vadd.f32 %v721, %v950
        %952 = vdwg.mxu0
        %v953 = vld [vmem:[%s7] sm:$0x1]
        %v955 = vperm.slane %v953, 0
        %v957 = vadd.f32 %v906, %v955
        %v958 = vadd.f32 %v909, %v955
        %v959 = vadd.f32 %v912, %v955
        %v960 = vadd.f32 %v915, %v955
        %v961 = vadd.f32 %v918, %v955
        %v962 = vadd.f32 %v921, %v955
        %v963 = vadd.f32 %v924, %v955
        %v964 = vadd.f32 %v927, %v955
        %v965 = vadd.f32 %v930, %v955
        %v966 = vadd.f32 %v933, %v955
        %v967 = vadd.f32 %v936, %v955
        %v968 = vadd.f32 %v939, %v955
        %v969 = vadd.f32 %v942, %v955
        %v970 = vadd.f32 %v945, %v955
        %v971 = vadd.f32 %v948, %v955
        %v972 = vadd.f32 %v951, %v955
        %v973 = vlaneseq
        %v974 = vshrl.u32 %v973, 7
        %v975 = vadd.s32 %v974, 8
        %v976 = vperm.slane %v739, 0
        %vm977 = vcmp.eq.s32.totalorder %v974, %v976
        %vm978 = vcmp.eq.s32.totalorder %v975, %v976
        %v979 = vsel %vm977, 1, 0
        %v980 = vsel %vm978, 1, 0
        %v981 = vcvt.s32.f32 %v979
        %v982 = vcvt.s32.f32 %v980
        %v983 = vld [vmem:[#allocation3] sm:$0xff]
        %v984 = vld [vmem:[#allocation3 + $0x8] sm:$0xff]
        %985 = vmatpush.msra.mxu0 %v972
        %986 = vmatpush.msra.mxu0 %v971
        %987 = vmatpush.msra.mxu0 %v970
        %988 = vmatpush.msra.mxu0 %v969
        %989 = vmatpush.msra.mxu0 %v968
        %990 = vmatpush.msra.mxu0 %v967
        %991 = vmatpush.msra.mxu0 %v966
        %992 = vmatpush.msra.mxu0 %v965
        %993 = vmatpush.msra.mxu0 %v964
        %994 = vmatpush.msra.mxu0 %v963
        %995 = vmatpush.msra.mxu0 %v962
        %996 = vmatpush.msra.mxu0 %v961
        %997 = vmatpush.msra.mxu0 %v960
        %998 = vmatpush.msra.mxu0 %v959
        %999 = vmatpush.msra.mxu0 %v958
        %1000 = vmatpush.msra.mxu0 %v957
        %1001 = vmatmul.f32.gmra.mxu0 %v981
        %v1002 = vpop.f32.mrf.mxu0
        %v1003 = vadd.f32 0.0, %v1002
        %1004 = vmatmul.f32.gmra.mxu0 %v982
        %v1005 = vpop.f32.mrf.mxu0
        %v1006 = vadd.f32 0.0, %v1005
        %1007 = vdwg.mxu0
        %v1008 = vadd.f32 %v983, %v1003
        %v1009 = vadd.f32 %v984, %v1006
        %vm1010 = vcmask 261120
        %1011 = vst.msk [vmem:[#allocation3] sm:$0xff] %vm1010, %v1008
        %1012 = vst.msk [vmem:[#allocation3 + $0x8] sm:$0xff] %vm1010, %v1009
        %p1013 = scmp.eq.s32.totalorder %s23, 1
        // Predicated region
        $region69: #{tpu_custom_call.1} parent=63 // pred_check
          %p1014 = pneg %p1013
        $region70: #{tpu_custom_call.1} parent=63 // pred_check_branch
          %1016 = sbr.rel (%p1014) target = $region72
        $region71: #{tpu_custom_call.1} parent=63 // pred_region
          %v1017 = vld [vmem:[#allocation3] sm:$0xff]
          %v1018 = vld [vmem:[#allocation3 + $0x8] sm:$0xff]
          %v1019 = vld [vmem:[%s0] sm:$0xff]
          %v1020 = vld [vmem:[%s0 + $0x8] sm:$0xff]
          %v1021 = vadd.f32 %v1017, %v1019
          %v1022 = vadd.f32 %v1018, %v1020
          %v1023 = vmax.f32 %v1021, 0.0
          %v1024 = vmax.f32 %v1022, 0.0
          %v1025 = vld [vmem:[%s9] sm:$0xff]
          %v1026 = vld [vmem:[%s9 + $0x8] sm:$0xff]
          %v1027 = vld [vmem:[%s9 + $0x10] sm:$0xff]
          %v1028 = vld [vmem:[%s9 + $0x18] sm:$0xff]
          %v1029 = vld [vmem:[%s9 + $0x20] sm:$0xff]
          %v1030 = vld [vmem:[%s9 + $0x28] sm:$0xff]
          %v1031 = vld [vmem:[%s9 + $0x30] sm:$0xff]
          %v1032 = vld [vmem:[%s9 + $0x38] sm:$0xff]
          %v1033 = vld [vmem:[%s10] sm:$0x3]
          %v1035 = vperm.slane %v1033, 0
          %v1036 = vperm.slane %v1033, 1
          %v1040 = vsel %vm1010, %v1023, 0
          %v1043 = vsel %vm1010, %v1024, 0
          %1045 = vmatpush.msra.mxu0 0.0
          %1046 = vmatpush.msra.mxu0 0.0
          %1047 = vmatpush.msra.mxu0 0.0
          %1048 = vmatpush.msra.mxu0 0.0
          %1049 = vmatpush.msra.mxu0 0.0
          %1050 = vmatpush.msra.mxu0 0.0
          %1051 = vmatpush.msra.mxu0 0.0
          %1052 = vmatpush.msra.mxu0 0.0
          %1053 = vmatpush.msra.mxu0 0.0
          %1054 = vmatpush.msra.mxu0 0.0
          %1055 = vmatpush.msra.mxu0 0.0
          %1056 = vmatpush.msra.mxu0 0.0
          %1057 = vmatpush.msra.mxu0 %v1031
          %1058 = vmatpush.msra.mxu0 %v1029
          %1059 = vmatpush.msra.mxu0 %v1027
          %1060 = vmatpush.msra.mxu0 %v1025
          %1061 = vmatmul.f32.gmra.mxu0 %v1040
          %v1062 = vpop.f32.mrf.mxu0
          %v1063 = vadd.f32 %v1035, %v1062
          %1064 = vmatmul.f32.gmra.mxu0 %v1043
          %v1065 = vpop.f32.mrf.mxu0
          %v1066 = vadd.f32 %v1035, %v1065
          %1067 = vdwg.mxu0
          %1068 = vmatpush.msra.mxu0 0.0
          %1069 = vmatpush.msra.mxu0 0.0
          %1070 = vmatpush.msra.mxu0 0.0
          %1071 = vmatpush.msra.mxu0 0.0
          %1072 = vmatpush.msra.mxu0 0.0
          %1073 = vmatpush.msra.mxu0 0.0
          %1074 = vmatpush.msra.mxu0 0.0
          %1075 = vmatpush.msra.mxu0 0.0
          %1076 = vmatpush.msra.mxu0 0.0
          %1077 = vmatpush.msra.mxu0 0.0
          %1078 = vmatpush.msra.mxu0 0.0
          %1079 = vmatpush.msra.mxu0 0.0
          %1080 = vmatpush.msra.mxu0 %v1032
          %1081 = vmatpush.msra.mxu0 %v1030
          %1082 = vmatpush.msra.mxu0 %v1028
          %1083 = vmatpush.msra.mxu0 %v1026
          %1084 = vmatmul.f32.gmra.mxu0 %v1040
          %v1085 = vpop.f32.mrf.mxu0
          %v1086 = vadd.f32 %v1036, %v1085
          %1087 = vmatmul.f32.gmra.mxu0 %v1043
          %v1088 = vpop.f32.mrf.mxu0
          %v1089 = vadd.f32 %v1036, %v1088
          %1090 = vdwg.mxu0
          %1091 = vst [vmem:[#allocation4] sm:$0xff] %v1063
          %1092 = vst [vmem:[#allocation4 + $0x8] sm:$0xff] %v1086
          %1093 = vst [vmem:[#allocation4 + $0x10] sm:$0xff] %v1066
          %1094 = vst [vmem:[#allocation4 + $0x18] sm:$0xff] %v1089
        $region72: #{tpu_custom_call.1} parent=63 // pred_fallthru
          _
        // Predicated region
        $region73: #{tpu_custom_call.1} parent=63 // pred_check
          %p1095 = pneg %p282
        $region74: #{tpu_custom_call.1} parent=63 // pred_check_branch
          %1097 = sbr.rel (%p1095) target = $region76
        $region75: #{tpu_custom_call.1} parent=63 // pred_region
          %1099 = vsyncadd [#allocation5], 0
          %s1100 = sshll.u32 [#allocation4], 4
          %s1101 = int_to_ptr.vmem [resolvable:$true] %s1100
          %s1102 = sshll.u32 %s11, 4
          %s1103 = int_to_ptr.hbm [resolvable:$true] %s1102
          %1108 = dma.vmem_to_hbm [thread:$0]  %s1101, 512, %s1103, [#allocation5], 256, 256, 16
        $region76: #{tpu_custom_call.1} parent=63 // pred_fallthru
          _
        // Predicated region
        $region77: #{tpu_custom_call.1} parent=63 // pred_check
          %p1109 = pneg %p282
        $region78: #{tpu_custom_call.1} parent=63 // pred_check_branch
          %1111 = sbr.rel (%p1109) target = $region80
        $region79: #{tpu_custom_call.1} parent=63 // pred_region
          %1113 = dma.done [#allocation5], 512
        $region80: #{tpu_custom_call.1} parent=63 // pred_fallthru
          _
      $region64: #{tpu_custom_call.1} parent=5 // pred_fallthru
        _
      %p1114 = scmp.le.s32.totalorder 2, %s18
      // Predicated region
      $region81: #{tpu_custom_call.1} parent=5 // pred_check
        %p1115 = pneg %p1114
      $region82: #{tpu_custom_call.1} parent=5 // pred_check_branch
        %1117 = sbr.rel (%p1115) target = $region84
      $region83: #{tpu_custom_call.1} parent=5 // pred_region
        %s1118 = ssub.s32 %s18, 2
      $region84: #{tpu_custom_call.1} parent=5 // pred_fallthru
        _
    $region6: #{tpu_custom_call.1} parent=1 // loop_footer
      %s22 = sadd.s32 1, %s18
    $region7: #{tpu_custom_call.1} parent=1 // loop_footer_branch
      %17 = sbr.rel target = $region3
    $region8: #{tpu_custom_call.1} parent=1 // loop_exit
      _
    %1119 = vsyncpa [#allocation5], 1
    %s1120 = scalar_lea.sflag [#allocation5], 1
    %1121 = vsyncpa %s1120, 1

</llo_original>
